<compile_context>
chip_gen: v7x
topology: tpu7x:2x2x1
jax: 0.10.0
libtpu: 0.0.40
codegen_flags: <defaults>
</compile_context>

<pallas_src>
import functools

import jax
import jax.numpy as jnp
from jax.experimental import pallas as pl
from jax.experimental.pallas import tpu as pltpu

IN_FEATURES = 500
OUT_FEATURES = 10
OUT_PAD = 128          # 10 -> 128 : lane-dense output block, no masked partial stores
TILE_B_MAX = 4096      # biggest batch tile (amortizes per-grid-step overhead)
MIN_SPLIT_ROWS = 256   # smallest tile when splitting a single-tile batch for megacore
VMEM_LIMIT_BYTES = 32 * 1024 * 1024


def _round_up(n, m):
    return ((n + m - 1) // m) * m


def _linear_kernel(x_ref, w_ref, b_ref, o_ref, *, compute_dtype):
    # x_ref: (tile_b, 500) in x's HBM dtype, w_ref: (500, 128) compute dtype,
    # b_ref: (1, 128) f32, o_ref: (tile_b, 128) compute dtype.
    x = x_ref[...].astype(compute_dtype)                       # cast in-kernel (free VPU work)
    acc = jnp.dot(x, w_ref[...], preferred_element_type=jnp.float32)
    o_ref[...] = (acc + b_ref[...]).astype(o_ref.dtype)        # f32 bias add, cast at store


@functools.partial(jax.jit, static_argnames=("compute_dtype", "min_pallas_batch"))
def uda_classifier_forward(x, weight, bias, *, compute_dtype=jnp.bfloat16,
                           min_pallas_batch=256):
    """fc2(x) = x @ weight.T + bias  (PyTorch nn.Linear(500, 10) layout).

    x:      (B, 500) float
    weight: (10, 500) float   (PyTorch (out, in) layout)
    bias:   (10,)    float
    returns (B, 10) in x.dtype
    """
    B, K = x.shape
    assert K == IN_FEATURES

    # --- small-batch fallback: launch/pad overhead would dominate the kernel.
    if B < min_pallas_batch:
        out = jnp.dot(x.astype(jnp.float32), weight.T.astype(jnp.float32))
        return (out + bias.astype(jnp.float32)).astype(x.dtype)

    # --- batch tiling -------------------------------------------------------
    b8 = _round_up(B, 8)
    if b8 <= TILE_B_MAX:
        # Whole batch fits one tile: split into >=2 tiles (>=256 rows each) so
        # both v7x TensorCores get work under dimension_semantics=("parallel",).
        tile_b = min(b8, max(MIN_SPLIT_ROWS, _round_up(pl.cdiv(b8, 2), 8)))
    else:
        tile_b = TILE_B_MAX
    grid = (pl.cdiv(B, tile_b),)   # partial final block is masked by Pallas

    # --- pad only the tiny weight/bias (OUT 10 -> 128); x stays untouched ---
    w_p = jnp.zeros((IN_FEATURES, OUT_PAD), dtype=compute_dtype)
    w_p = w_p.at[:, :OUT_FEATURES].set(weight.T.astype(compute_dtype))
    b_p = jnp.zeros((1, OUT_PAD), dtype=jnp.float32)
    b_p = b_p.at[0, :OUT_FEATURES].set(bias.astype(jnp.float32))

    out_dtype = compute_dtype  # f32 path -> exact f32 out; bf16 path -> half the write bytes

    cost = pl.CostEstimate(
        flops=2 * B * IN_FEATURES * OUT_PAD,
        transcendentals=0,
        bytes_accessed=(x.size * x.dtype.itemsize
                        + w_p.size * w_p.dtype.itemsize
                        + b_p.size * 4
                        + B * OUT_PAD * jnp.dtype(out_dtype).itemsize),
    )

    out = pl.pallas_call(
        functools.partial(_linear_kernel, compute_dtype=compute_dtype),
        out_shape=jax.ShapeDtypeStruct((B, OUT_PAD), out_dtype),
        grid_spec=pltpu.PrefetchScalarGridSpec(
            num_scalar_prefetch=0,
            grid=grid,
            in_specs=[
                # x: streamed per batch tile, unpadded (last dim == full array dim).
                pl.BlockSpec((tile_b, IN_FEATURES), lambda i: (i, 0)),
                # W, b: same block every step -> VMEM-resident across the grid.
                pl.BlockSpec((IN_FEATURES, OUT_PAD), lambda i: (0, 0)),
                pl.BlockSpec((1, OUT_PAD), lambda i: (0, 0)),
            ],
            out_specs=pl.BlockSpec((tile_b, OUT_PAD), lambda i: (i, 0)),
        ),
        compiler_params=pltpu.CompilerParams(
            # Independent batch tiles -> shard across TensorCores (v7x: 2x TC).
            dimension_semantics=("parallel",),
            vmem_limit_bytes=VMEM_LIMIT_BYTES,
        ),
        cost_estimate=cost,
    )(x, w_p, b_p)

    # Strip lane padding; downstream code never sees the 118 pad lanes.
    return out[:, :OUT_FEATURES].astype(x.dtype)


if __name__ == "__main__":
    key = jax.random.PRNGKey(0)
    kx, kw, kb = jax.random.split(key, 3)

    # nn.Linear default init: U(-1/sqrt(in_features), 1/sqrt(in_features)).
    bound = 1.0 / (IN_FEATURES ** 0.5)
    w = jax.random.uniform(kw, (OUT_FEATURES, IN_FEATURES), jnp.float32,
                           minval=-bound, maxval=bound)   # PyTorch (out, in)
    b = jax.random.uniform(kb, (OUT_FEATURES,), jnp.float32,
                           minval=-bound, maxval=bound)

    # --- Pallas path: batch large enough to hit the kernel (2 grid tiles). ---
    B = 512
    x = jax.random.normal(kx, (B, IN_FEATURES), dtype=jnp.float32)
    ref = x @ w.T + b

    # f32 compute path: tight correctness check of the kernel plumbing.
    out_f32 = uda_classifier_forward(x, w, b, compute_dtype=jnp.float32)
    jax.block_until_ready(out_f32)
    assert out_f32.shape == (B, OUT_FEATURES)
    assert jnp.allclose(out_f32, ref, atol=1e-4, rtol=1e-4)

    # bf16 compute path (default): bf16 matmul + bf16 output stream.
    out_bf16 = uda_classifier_forward(x, w, b)
    jax.block_until_ready(out_bf16)
    assert out_bf16.shape == (B, OUT_FEATURES)
    assert jnp.allclose(out_bf16, ref, atol=3e-2, rtol=3e-2)

    # --- Small-batch fallback path (launch-overhead regime -> plain dot). ---
    xs = jax.random.normal(kx, (8, IN_FEATURES), dtype=jnp.float32)
    out_small = uda_classifier_forward(xs, w, b)
    jax.block_until_ready(out_small)
    assert out_small.shape == (8, OUT_FEATURES)
    assert jnp.allclose(out_small, xs @ w.T + b, atol=1e-4, rtol=1e-4)

    print("KERNEL_OK")
</pallas_src>

<mosaic_0001>
module attributes {stable_mosaic.version = 11 : i64} {
  func.func @_linear_kernel(%arg0: i32, %arg1: memref<256x500xf32, #tpu.memory_space<vmem>>, %arg2: memref<500x128xf32, #tpu.memory_space<vmem>>, %arg3: memref<1x128xf32, #tpu.memory_space<vmem>>, %arg4: memref<256x128xf32, #tpu.memory_space<vmem>>) attributes {dimension_semantics = [#tpu.dimension_semantics<parallel>], iteration_bounds = array<i64: 2>, scalar_prefetch = 0 : i64, scratch_operands = 0 : i64, tpu.core_type = #tpu.core_type<tc>, window_params = [{transform_indices = @transform_0, window_bounds = array<i64: 256, 500>}, {pipeline_mode = #tpu.pipeline_mode<synchronous>, transform_indices = @transform_1, window_bounds = array<i64: 500, 128>}, {pipeline_mode = #tpu.pipeline_mode<synchronous>, transform_indices = @transform_2, window_bounds = array<i64: 1, 128>}, {transform_indices = @transform_3, window_bounds = array<i64: 256, 128>}]} {
    %c0 = arith.constant 0 : index
    %c0_0 = arith.constant 0 : index
    %0 = vector.load %arg1[%c0, %c0_0] : memref<256x500xf32, #tpu.memory_space<vmem>>, vector<256x500xf32>
    %c0_1 = arith.constant 0 : index
    %c0_2 = arith.constant 0 : index
    %1 = vector.load %arg2[%c0_1, %c0_2] : memref<500x128xf32, #tpu.memory_space<vmem>>, vector<500x128xf32>
    %cst = arith.constant dense<0.000000e+00> : vector<256x128xf32>
    %2 = tpu.matmul %0, %1, %cst {dimension_numbers = #tpu.dot_dimension_numbers<[1], [0], [0], [1], [0, 0, 1, 1], [], []>} : vector<256x500xf32>, vector<500x128xf32>, vector<256x128xf32> -> vector<256x128xf32>
    %c0_3 = arith.constant 0 : index
    %c0_4 = arith.constant 0 : index
    %3 = vector.load %arg3[%c0_3, %c0_4] : memref<1x128xf32, #tpu.memory_space<vmem>>, vector<1x128xf32>
    %4 = vector.broadcast %3 : vector<1x128xf32> to vector<256x128xf32>
    %5 = arith.addf %2, %4 : vector<256x128xf32>
    %c0_5 = arith.constant 0 : index
    %c0_6 = arith.constant 0 : index
    %6 = vector.load %arg4[%c0_5, %c0_6] : memref<256x128xf32, #tpu.memory_space<vmem>>, vector<256x128xf32>
    tpu.vector_store %arg4[%c0_5, %c0_6], %5 {strides = array<i32>} : memref<256x128xf32, #tpu.memory_space<vmem>>, vector<256x128xf32>,
    return
  }
  func.func @transform_0(%arg0: i32) -> (i32, i32) {
    %c0_i32 = arith.constant 0 : i32
    %c0_i32_0 = arith.constant 0 : i32
    return %arg0, %c0_i32 : i32, i32
  }
  func.func @transform_1(%arg0: i32) -> (i32, i32) {
    %c0_i32 = arith.constant 0 : i32
    %c0_i32_0 = arith.constant 0 : i32
    %c0_i32_1 = arith.constant 0 : i32
    return %c0_i32, %c0_i32_0 : i32, i32
  }
  func.func @transform_2(%arg0: i32) -> (i32, i32) {
    %c0_i32 = arith.constant 0 : i32
    %c0_i32_0 = arith.constant 0 : i32
    %c0_i32_1 = arith.constant 0 : i32
    return %c0_i32, %c0_i32_0 : i32, i32
  }
  func.func @transform_3(%arg0: i32) -> (i32, i32) {
    %c0_i32 = arith.constant 0 : i32
    %c0_i32_0 = arith.constant 0 : i32
    return %arg0, %c0_i32 : i32, i32
  }
}

</mosaic_0001>

<llo_original>
// kernel: uda_classifier_forward.1
$region0: #{uda_classifier_forward.1}
  #allocation0 [shape = 'u32[]', space=smem, size = 0x4, offset = 0x4, fixed_abs, tag = 'smem constant byte address 0x4 - core index']
  #allocation1 [shape = 'u32[144,128]{1,0:T(1,128)}', space=vmem, size = 0x12000, scoped, tag = 'internal scratch']
  %s0 = inlined_call_operand.vmem [shape: f32[512,500], index: 0, kind: input, shape index: {}]
  %s1 = inlined_call_operand.vmem [shape: f32[500,128], index: 1, kind: input, shape index: {}]
  %s2 = inlined_call_operand.vmem [shape: f32[1,128], index: 2, kind: input, shape index: {}]
  %s3 = inlined_call_operand.vmem [shape: f32[512,128], index: 3, kind: output, shape index: {}]
  %s4 = sld [smem:[#allocation0]]
  $region45: #{uda_classifier_forward.1} parent=0
    _
  %s6 = ssub.s32 1, %s4
  %s7 = scalar_select 0, %s6, %s4
  loop: start=0, step=1, limit=4
  $region2: #{uda_classifier_forward.1} parent=0 // loop_pre_header
    _
  $region3: #{uda_classifier_forward.1} parent=0 // loop_header
    %s9 = sphi 0, %s13
    %p10 = scmp.ge.s32.totalorder %s9, 4
    %s19 = sphi 0, %s21
    %s22 = sphi 0, %s19
    %s23 = sphi 0, %s22
    %s39 = sphi 0, %s23
    %s43 = sphi 0, %s43
    %s45 = sphi 0, %s43
    %s46 = sphi 0, %s45
    %s60 = sphi 0, %s46
    %s64 = sphi 0, %s64
    %s66 = sphi 0, %s64
    %s67 = sphi 0, %s66
    %s81 = sphi 0, %s67
    %s87 = sphi 0, %s89
    %s90 = sphi 0, %s87
    %s91 = sphi 0, %s90
    %s107 = sphi 0, %s91
  $region4: #{uda_classifier_forward.1} parent=0 // loop_header_branch
    %12 = sbr.rel (%p10) target = $region8
  $region5: #{uda_classifier_forward.1} parent=0 // loop_body
    %s14 = ssub.s32 %s9, 1
    %s15 = ssub.s32 %s9, 2
    %s16 = sadd.s32 %s9, 1
    %s17 = ssub.s32 %s9, %s16
    %p18 = scmp.eq.s32.totalorder %s17, 0
    %s20 = sadd.s32 %s19, 1
    %s21 = scalar_select %p18, %s19, %s20
    %p24 = pneg %p18
    %p25 = scmp.eq.s32.totalorder %s9, 1
    %p26 = por %p24, %p25
    %p27 = scmp.ne.s32.totalorder %s19, %s22
    %p28 = scmp.eq.s32.totalorder %s9, 0
    %p29 = por %p27, %p28
    %p30 = scmp.ne.s32.totalorder %s19, %s22
    %p31 = scmp.eq.s32.totalorder %s14, 1
    %p32 = por %p30, %p31
    %p33 = scmp.ne.s32.totalorder %s22, %s23
    %p34 = scmp.eq.s32.totalorder %s14, 0
    %p35 = por %p33, %p34
    %p36 = scmp.ne.s32.totalorder %s22, %s23
    %p37 = scmp.eq.s32.totalorder %s15, 1
    %p38 = por %p36, %p37
    %p40 = scmp.ne.s32.totalorder %s23, %s39
    %p41 = scmp.eq.s32.totalorder %s15, 0
    %p42 = por %p40, %p41
    %s44 = sadd.s32 %s43, 1
    %p47 = scmp.eq.s32.totalorder %s9, 1
    %p48 = scmp.ne.s32.totalorder %s43, %s45
    %p49 = scmp.eq.s32.totalorder %s9, 0
    %p50 = por %p48, %p49
    %p51 = scmp.ne.s32.totalorder %s43, %s45
    %p52 = scmp.eq.s32.totalorder %s14, 1
    %p53 = por %p51, %p52
    %p54 = scmp.ne.s32.totalorder %s45, %s46
    %p55 = scmp.eq.s32.totalorder %s14, 0
    %p56 = por %p54, %p55
    %p57 = scmp.ne.s32.totalorder %s45, %s46
    %p58 = scmp.eq.s32.totalorder %s15, 1
    %p59 = por %p57, %p58
    %p61 = scmp.ne.s32.totalorder %s46, %s60
    %p62 = scmp.eq.s32.totalorder %s15, 0
    %p63 = por %p61, %p62
    %s65 = sadd.s32 %s64, 1
    %p68 = scmp.eq.s32.totalorder %s9, 1
    %p69 = scmp.ne.s32.totalorder %s64, %s66
    %p70 = scmp.eq.s32.totalorder %s9, 0
    %p71 = por %p69, %p70
    %p72 = scmp.ne.s32.totalorder %s64, %s66
    %p73 = scmp.eq.s32.totalorder %s14, 1
    %p74 = por %p72, %p73
    %p75 = scmp.ne.s32.totalorder %s66, %s67
    %p76 = scmp.eq.s32.totalorder %s14, 0
    %p77 = por %p75, %p76
    %p78 = scmp.ne.s32.totalorder %s66, %s67
    %p79 = scmp.eq.s32.totalorder %s15, 1
    %p80 = por %p78, %p79
    %p82 = scmp.ne.s32.totalorder %s67, %s81
    %p83 = scmp.eq.s32.totalorder %s15, 0
    %p84 = por %p82, %p83
    %s85 = ssub.s32 %s9, %s16
    %p86 = scmp.eq.s32.totalorder %s85, 0
    %s88 = sadd.s32 %s87, 1
    %s89 = scalar_select %p86, %s87, %s88
    %p92 = pneg %p86
    %p93 = scmp.eq.s32.totalorder %s9, 1
    %p94 = por %p92, %p93
    %p95 = scmp.ne.s32.totalorder %s87, %s90
    %p96 = scmp.eq.s32.totalorder %s9, 0
    %p97 = por %p95, %p96
    %p98 = scmp.ne.s32.totalorder %s87, %s90
    %p99 = scmp.eq.s32.totalorder %s14, 1
    %p100 = por %p98, %p99
    %p101 = scmp.ne.s32.totalorder %s90, %s91
    %p102 = scmp.eq.s32.totalorder %s14, 0
    %p103 = por %p101, %p102
    %p104 = scmp.ne.s32.totalorder %s90, %s91
    %p105 = scmp.eq.s32.totalorder %s15, 1
    %p106 = por %p104, %p105
    %p108 = scmp.ne.s32.totalorder %s91, %s107
    %p109 = scmp.eq.s32.totalorder %s15, 0
    %p110 = por %p108, %p109
    %p111 = scmp.le.s32.totalorder 1, %s9
    %p112 = scmp.lt.s32.totalorder %s9, 3
    %p113 = pnand %p111, %p112
    %p114 = pneg %p113
    // Predicated region
    $region9: #{uda_classifier_forward.1} parent=5 // pred_check
      _
    $region10: #{uda_classifier_forward.1} parent=5 // pred_check_branch
      %116 = sbr.rel (%p113) target = $region12
    $region11: #{uda_classifier_forward.1} parent=5 // pred_region
      %s117 = ssub.s32 %s9, 1
      // Predicated region
      $region13: #{uda_classifier_forward.1} parent=11 // pred_check
        %p118 = pneg %p56
      $region14: #{uda_classifier_forward.1} parent=11 // pred_check_branch
        %120 = sbr.rel (%p118) target = $region16
      $region15: #{uda_classifier_forward.1} parent=11 // pred_region
        _
      $region16: #{uda_classifier_forward.1} parent=11 // pred_fallthru
        _
      // Predicated region
      $region17: #{uda_classifier_forward.1} parent=11 // pred_check
        %p121 = pneg %p77
      $region18: #{uda_classifier_forward.1} parent=11 // pred_check_branch
        %123 = sbr.rel (%p121) target = $region20
      $region19: #{uda_classifier_forward.1} parent=11 // pred_region
        _
      $region20: #{uda_classifier_forward.1} parent=11 // pred_fallthru
        _
    $region12: #{uda_classifier_forward.1} parent=5 // pred_fallthru
      _
    %p124 = scmp.lt.s32.totalorder %s9, 2
    // Predicated region
    $region21: #{uda_classifier_forward.1} parent=5 // pred_check
      %p125 = pneg %p124
    $region22: #{uda_classifier_forward.1} parent=5 // pred_check_branch
      %127 = sbr.rel (%p125) target = $region24
    $region23: #{uda_classifier_forward.1} parent=5 // pred_region
      // Predicated region
      $region25: #{uda_classifier_forward.1} parent=23 // pred_check
        %p128 = pneg %p29
      $region26: #{uda_classifier_forward.1} parent=23 // pred_check_branch
        %130 = sbr.rel (%p128) target = $region28
      $region27: #{uda_classifier_forward.1} parent=23 // pred_region
        %s131 = smul.u32 32, %s9
        %p132 = scmp.lt.s32.totalorder %s131, 63
        %s133 = scalar_select %p132, %s131, 63
        %s134 = smul.addr %s133, 4
        %s135 = smul.addr %s134, 8
        %s136 = scalar_lea.vmem %s0, %s135
        %s137 = smul.u32 32, %s9
      $region28: #{uda_classifier_forward.1} parent=23 // pred_fallthru
        _
    $region24: #{uda_classifier_forward.1} parent=5 // pred_fallthru
      _
    %p138 = scmp.le.s32.totalorder 1, %s9
    %p139 = scmp.lt.s32.totalorder %s9, 3
    %p140 = pnand %p138, %p139
    %p141 = pneg %p140
    // Predicated region
    $region29: #{uda_classifier_forward.1} parent=5 // pred_check
      _
    $region30: #{uda_classifier_forward.1} parent=5 // pred_check_branch
      %143 = sbr.rel (%p140) target = $region32
    $region31: #{uda_classifier_forward.1} parent=5 // pred_region
      %s144 = ssub.s32 %s9, 1
      %s145 = smul.u32 32, %s14
      %p146 = scmp.lt.s32.totalorder %s145, 63
      %s147 = scalar_select %p146, %s145, 63
      %s148 = smul.addr %s147, 4
      %s149 = smul.addr %s148, 8
      %s150 = scalar_lea.vmem %s0, %s149
      %p151 = pneg %p35
      %p152 = pneg %p32
      %p153 = pneg %p56
      %p154 = pneg %p53
      %p155 = pneg %p77
      %p156 = pneg %p74
      %p157 = pneg %p103
      %p158 = pneg %p100
      %s159 = smul.u32 32, %s14
      %p160 = scmp.lt.s32.totalorder %s159, 63
      %s161 = scalar_select %p160, %s159, 63
      %s162 = smul.addr %s161, 8
      %s163 = scalar_lea.vmem %s3, %s162
      %s164 = smul.u32 32, %s14
      %p165 = scmp.lt.s32.totalorder %s164, 63
      %s166 = scalar_select %p165, %s164, 63
      %s167 = smul.addr %s166, 4
      %s168 = smul.addr %s167, 8
      %s169 = scalar_lea.vmem %s0, %s168
      %s170 = smul.u32 32, %s14
      %s171 = smul.u32 32, %s14
      %p172 = scmp.lt.s32.totalorder %s171, 63
      %s173 = scalar_select %p172, %s171, 63
      %s174 = smul.addr %s173, 8
      %s175 = scalar_lea.vmem %s3, %s174
      %s176 = smul.u32 32, %s14
      %v177 = vld [vmem:[%s169] sm:$0xff]
      %v178 = vld [vmem:[%s169 + $0x8] sm:$0xff]
      %v179 = vld [vmem:[%s169 + $0x10] sm:$0xff]
      %v180 = vld [vmem:[%s169 + $0x18] sm:$0xff]
      %v181 = vld [vmem:[%s169 + $0x20] sm:$0xff]
      %v182 = vld [vmem:[%s169 + $0x28] sm:$0xff]
      %v183 = vld [vmem:[%s169 + $0x30] sm:$0xff]
      %v184 = vld [vmem:[%s169 + $0x38] sm:$0xff]
      %v185 = vld [vmem:[%s169 + $0x40] sm:$0xff]
      %v186 = vld [vmem:[%s169 + $0x48] sm:$0xff]
      %v187 = vld [vmem:[%s169 + $0x50] sm:$0xff]
      %v188 = vld [vmem:[%s169 + $0x58] sm:$0xff]
      %v189 = vld [vmem:[%s169 + $0x60] sm:$0xff]
      %v190 = vld [vmem:[%s169 + $0x68] sm:$0xff]
      %v191 = vld [vmem:[%s169 + $0x70] sm:$0xff]
      %v192 = vld [vmem:[%s169 + $0x78] sm:$0xff]
      %v193 = vld [vmem:[%s169 + $0x80] sm:$0xff]
      %v194 = vld [vmem:[%s169 + $0x88] sm:$0xff]
      %v195 = vld [vmem:[%s169 + $0x90] sm:$0xff]
      %v196 = vld [vmem:[%s169 + $0x98] sm:$0xff]
      %v197 = vld [vmem:[%s169 + $0xa0] sm:$0xff]
      %v198 = vld [vmem:[%s169 + $0xa8] sm:$0xff]
      %v199 = vld [vmem:[%s169 + $0xb0] sm:$0xff]
      %v200 = vld [vmem:[%s169 + $0xb8] sm:$0xff]
      %v201 = vld [vmem:[%s169 + $0xc0] sm:$0xff]
      %v202 = vld [vmem:[%s169 + $0xc8] sm:$0xff]
      %v203 = vld [vmem:[%s169 + $0xd0] sm:$0xff]
      %v204 = vld [vmem:[%s169 + $0xd8] sm:$0xff]
      %v205 = vld [vmem:[%s169 + $0xe0] sm:$0xff]
      %v206 = vld [vmem:[%s169 + $0xe8] sm:$0xff]
      %v207 = vld [vmem:[%s169 + $0xf0] sm:$0xff]
      %v208 = vld [vmem:[%s169 + $0xf8] sm:$0xff]
      %v209 = vld [vmem:[%s169 + $0x100] sm:$0xff]
      %v210 = vld [vmem:[%s169 + $0x108] sm:$0xff]
      %v211 = vld [vmem:[%s169 + $0x110] sm:$0xff]
      %v212 = vld [vmem:[%s169 + $0x118] sm:$0xff]
      %v213 = vld [vmem:[%s169 + $0x120] sm:$0xff]
      %v214 = vld [vmem:[%s169 + $0x128] sm:$0xff]
      %v215 = vld [vmem:[%s169 + $0x130] sm:$0xff]
      %v216 = vld [vmem:[%s169 + $0x138] sm:$0xff]
      %v217 = vld [vmem:[%s169 + $0x140] sm:$0xff]
      %v218 = vld [vmem:[%s169 + $0x148] sm:$0xff]
      %v219 = vld [vmem:[%s169 + $0x150] sm:$0xff]
      %v220 = vld [vmem:[%s169 + $0x158] sm:$0xff]
      %v221 = vld [vmem:[%s169 + $0x160] sm:$0xff]
      %v222 = vld [vmem:[%s169 + $0x168] sm:$0xff]
      %v223 = vld [vmem:[%s169 + $0x170] sm:$0xff]
      %v224 = vld [vmem:[%s169 + $0x178] sm:$0xff]
      %v225 = vld [vmem:[%s169 + $0x180] sm:$0xff]
      %v226 = vld [vmem:[%s169 + $0x188] sm:$0xff]
      %v227 = vld [vmem:[%s169 + $0x190] sm:$0xff]
      %v228 = vld [vmem:[%s169 + $0x198] sm:$0xff]
      %v229 = vld [vmem:[%s169 + $0x1a0] sm:$0xff]
      %v230 = vld [vmem:[%s169 + $0x1a8] sm:$0xff]
      %v231 = vld [vmem:[%s169 + $0x1b0] sm:$0xff]
      %v232 = vld [vmem:[%s169 + $0x1b8] sm:$0xff]
      %v233 = vld [vmem:[%s169 + $0x1c0] sm:$0xff]
      %v234 = vld [vmem:[%s169 + $0x1c8] sm:$0xff]
      %v235 = vld [vmem:[%s169 + $0x1d0] sm:$0xff]
      %v236 = vld [vmem:[%s169 + $0x1d8] sm:$0xff]
      %v237 = vld [vmem:[%s169 + $0x1e0] sm:$0xff]
      %v238 = vld [vmem:[%s169 + $0x1e8] sm:$0xff]
      %v239 = vld [vmem:[%s169 + $0x1f0] sm:$0xff]
      %v240 = vld [vmem:[%s169 + $0x1f8] sm:$0xff]
      %v241 = vld [vmem:[%s169 + $0x200] sm:$0xff]
      %v242 = vld [vmem:[%s169 + $0x208] sm:$0xff]
      %v243 = vld [vmem:[%s169 + $0x210] sm:$0xff]
      %v244 = vld [vmem:[%s169 + $0x218] sm:$0xff]
      %v245 = vld [vmem:[%s169 + $0x220] sm:$0xff]
      %v246 = vld [vmem:[%s169 + $0x228] sm:$0xff]
      %v247 = vld [vmem:[%s169 + $0x230] sm:$0xff]
      %v248 = vld [vmem:[%s169 + $0x238] sm:$0xff]
      %v249 = vld [vmem:[%s169 + $0x240] sm:$0xff]
      %v250 = vld [vmem:[%s169 + $0x248] sm:$0xff]
      %v251 = vld [vmem:[%s169 + $0x250] sm:$0xff]
      %v252 = vld [vmem:[%s169 + $0x258] sm:$0xff]
      %v253 = vld [vmem:[%s169 + $0x260] sm:$0xff]
      %v254 = vld [vmem:[%s169 + $0x268] sm:$0xff]
      %v255 = vld [vmem:[%s169 + $0x270] sm:$0xff]
      %v256 = vld [vmem:[%s169 + $0x278] sm:$0xff]
      %v257 = vld [vmem:[%s169 + $0x280] sm:$0xff]
      %v258 = vld [vmem:[%s169 + $0x288] sm:$0xff]
      %v259 = vld [vmem:[%s169 + $0x290] sm:$0xff]
      %v260 = vld [vmem:[%s169 + $0x298] sm:$0xff]
      %v261 = vld [vmem:[%s169 + $0x2a0] sm:$0xff]
      %v262 = vld [vmem:[%s169 + $0x2a8] sm:$0xff]
      %v263 = vld [vmem:[%s169 + $0x2b0] sm:$0xff]
      %v264 = vld [vmem:[%s169 + $0x2b8] sm:$0xff]
      %v265 = vld [vmem:[%s169 + $0x2c0] sm:$0xff]
      %v266 = vld [vmem:[%s169 + $0x2c8] sm:$0xff]
      %v267 = vld [vmem:[%s169 + $0x2d0] sm:$0xff]
      %v268 = vld [vmem:[%s169 + $0x2d8] sm:$0xff]
      %v269 = vld [vmem:[%s169 + $0x2e0] sm:$0xff]
      %v270 = vld [vmem:[%s169 + $0x2e8] sm:$0xff]
      %v271 = vld [vmem:[%s169 + $0x2f0] sm:$0xff]
      %v272 = vld [vmem:[%s169 + $0x2f8] sm:$0xff]
      %v273 = vld [vmem:[%s169 + $0x300] sm:$0xff]
      %v274 = vld [vmem:[%s169 + $0x308] sm:$0xff]
      %v275 = vld [vmem:[%s169 + $0x310] sm:$0xff]
      %v276 = vld [vmem:[%s169 + $0x318] sm:$0xff]
      %v277 = vld [vmem:[%s169 + $0x320] sm:$0xff]
      %v278 = vld [vmem:[%s169 + $0x328] sm:$0xff]
      %v279 = vld [vmem:[%s169 + $0x330] sm:$0xff]
      %v280 = vld [vmem:[%s169 + $0x338] sm:$0xff]
      %v281 = vld [vmem:[%s169 + $0x340] sm:$0xff]
      %v282 = vld [vmem:[%s169 + $0x348] sm:$0xff]
      %v283 = vld [vmem:[%s169 + $0x350] sm:$0xff]
      %v284 = vld [vmem:[%s169 + $0x358] sm:$0xff]
      %v285 = vld [vmem:[%s169 + $0x360] sm:$0xff]
      %v286 = vld [vmem:[%s169 + $0x368] sm:$0xff]
      %v287 = vld [vmem:[%s169 + $0x370] sm:$0xff]
      %v288 = vld [vmem:[%s169 + $0x378] sm:$0xff]
      %v289 = vld [vmem:[%s169 + $0x380] sm:$0xff]
      %v290 = vld [vmem:[%s169 + $0x388] sm:$0xff]
      %v291 = vld [vmem:[%s169 + $0x390] sm:$0xff]
      %v292 = vld [vmem:[%s169 + $0x398] sm:$0xff]
      %v293 = vld [vmem:[%s169 + $0x3a0] sm:$0xff]
      %v294 = vld [vmem:[%s169 + $0x3a8] sm:$0xff]
      %v295 = vld [vmem:[%s169 + $0x3b0] sm:$0xff]
      %v296 = vld [vmem:[%s169 + $0x3b8] sm:$0xff]
      %v297 = vld [vmem:[%s169 + $0x3c0] sm:$0xff]
      %v298 = vld [vmem:[%s169 + $0x3c8] sm:$0xff]
      %v299 = vld [vmem:[%s169 + $0x3d0] sm:$0xff]
      %v300 = vld [vmem:[%s169 + $0x3d8] sm:$0xff]
      %v301 = vld [vmem:[%s169 + $0x3e0] sm:$0xff]
      %v302 = vld [vmem:[%s169 + $0x3e8] sm:$0xff]
      %v303 = vld [vmem:[%s169 + $0x3f0] sm:$0xff]
      %v304 = vld [vmem:[%s169 + $0x3f8] sm:$0xff]
      %v305 = vld [vmem:[%s1] sm:$0xff]
      %v306 = vld [vmem:[%s1 + $0x8] sm:$0xff]
      %v307 = vld [vmem:[%s1 + $0x10] sm:$0xff]
      %v308 = vld [vmem:[%s1 + $0x18] sm:$0xff]
      %v309 = vld [vmem:[%s1 + $0x20] sm:$0xff]
      %v310 = vld [vmem:[%s1 + $0x28] sm:$0xff]
      %v311 = vld [vmem:[%s1 + $0x30] sm:$0xff]
      %v312 = vld [vmem:[%s1 + $0x38] sm:$0xff]
      %v313 = vld [vmem:[%s1 + $0x40] sm:$0xff]
      %v314 = vld [vmem:[%s1 + $0x48] sm:$0xff]
      %v315 = vld [vmem:[%s1 + $0x50] sm:$0xff]
      %v316 = vld [vmem:[%s1 + $0x58] sm:$0xff]
      %v317 = vld [vmem:[%s1 + $0x60] sm:$0xff]
      %v318 = vld [vmem:[%s1 + $0x68] sm:$0xff]
      %v319 = vld [vmem:[%s1 + $0x70] sm:$0xff]
      %v320 = vld [vmem:[%s1 + $0x78] sm:$0xff]
      %v321 = vld [vmem:[%s1 + $0x80] sm:$0xff]
      %v322 = vld [vmem:[%s1 + $0x88] sm:$0xff]
      %v323 = vld [vmem:[%s1 + $0x90] sm:$0xff]
      %v324 = vld [vmem:[%s1 + $0x98] sm:$0xff]
      %v325 = vld [vmem:[%s1 + $0xa0] sm:$0xff]
      %v326 = vld [vmem:[%s1 + $0xa8] sm:$0xff]
      %v327 = vld [vmem:[%s1 + $0xb0] sm:$0xff]
      %v328 = vld [vmem:[%s1 + $0xb8] sm:$0xff]
      %v329 = vld [vmem:[%s1 + $0xc0] sm:$0xff]
      %v330 = vld [vmem:[%s1 + $0xc8] sm:$0xff]
      %v331 = vld [vmem:[%s1 + $0xd0] sm:$0xff]
      %v332 = vld [vmem:[%s1 + $0xd8] sm:$0xff]
      %v333 = vld [vmem:[%s1 + $0xe0] sm:$0xff]
      %v334 = vld [vmem:[%s1 + $0xe8] sm:$0xff]
      %v335 = vld [vmem:[%s1 + $0xf0] sm:$0xff]
      %v336 = vld [vmem:[%s1 + $0xf8] sm:$0xff]
      %v337 = vld [vmem:[%s1 + $0x100] sm:$0xff]
      %v338 = vld [vmem:[%s1 + $0x108] sm:$0xff]
      %v339 = vld [vmem:[%s1 + $0x110] sm:$0xff]
      %v340 = vld [vmem:[%s1 + $0x118] sm:$0xff]
      %v341 = vld [vmem:[%s1 + $0x120] sm:$0xff]
      %v342 = vld [vmem:[%s1 + $0x128] sm:$0xff]
      %v343 = vld [vmem:[%s1 + $0x130] sm:$0xff]
      %v344 = vld [vmem:[%s1 + $0x138] sm:$0xff]
      %v345 = vld [vmem:[%s1 + $0x140] sm:$0xff]
      %v346 = vld [vmem:[%s1 + $0x148] sm:$0xff]
      %v347 = vld [vmem:[%s1 + $0x150] sm:$0xff]
      %v348 = vld [vmem:[%s1 + $0x158] sm:$0xff]
      %v349 = vld [vmem:[%s1 + $0x160] sm:$0xff]
      %v350 = vld [vmem:[%s1 + $0x168] sm:$0xff]
      %v351 = vld [vmem:[%s1 + $0x170] sm:$0xff]
      %v352 = vld [vmem:[%s1 + $0x178] sm:$0xff]
      %v353 = vld [vmem:[%s1 + $0x180] sm:$0xff]
      %v354 = vld [vmem:[%s1 + $0x188] sm:$0xff]
      %v355 = vld [vmem:[%s1 + $0x190] sm:$0xff]
      %v356 = vld [vmem:[%s1 + $0x198] sm:$0xff]
      %v357 = vld [vmem:[%s1 + $0x1a0] sm:$0xff]
      %v358 = vld [vmem:[%s1 + $0x1a8] sm:$0xff]
      %v359 = vld [vmem:[%s1 + $0x1b0] sm:$0xff]
      %v360 = vld [vmem:[%s1 + $0x1b8] sm:$0xff]
      %v361 = vld [vmem:[%s1 + $0x1c0] sm:$0xff]
      %v362 = vld [vmem:[%s1 + $0x1c8] sm:$0xff]
      %v363 = vld [vmem:[%s1 + $0x1d0] sm:$0xff]
      %v364 = vld [vmem:[%s1 + $0x1d8] sm:$0xff]
      %v365 = vld [vmem:[%s1 + $0x1e0] sm:$0xff]
      %v366 = vld [vmem:[%s1 + $0x1e8] sm:$0xff]
      %v367 = vld [vmem:[%s1 + $0x1f0] sm:$0xf]
      %v368 = vld [vmem:[%s2] sm:$0x1]
      %v370 = vlaneseq
      %v371 = vshrl.u32 %v370, 7
      %v372 = vsub.s32 0, %v371
      %v373 = vrot.slane %v368, %v372
      %vm375 = vcmask 949248
      %v377 = vsel %vm375, %v180, 0
      %v380 = vsel %vm375, %v184, 0
      %v383 = vsel %vm375, %v188, 0
      %v386 = vsel %vm375, %v192, 0
      %v389 = vsel %vm375, %v196, 0
      %v392 = vsel %vm375, %v200, 0
      %v395 = vsel %vm375, %v204, 0
      %v398 = vsel %vm375, %v208, 0
      %v401 = vsel %vm375, %v212, 0
      %v404 = vsel %vm375, %v216, 0
      %v407 = vsel %vm375, %v220, 0
      %v410 = vsel %vm375, %v224, 0
      %v413 = vsel %vm375, %v228, 0
      %v416 = vsel %vm375, %v232, 0
      %v419 = vsel %vm375, %v236, 0
      %v422 = vsel %vm375, %v240, 0
      %v425 = vsel %vm375, %v244, 0
      %v428 = vsel %vm375, %v248, 0
      %v431 = vsel %vm375, %v252, 0
      %v434 = vsel %vm375, %v256, 0
      %v437 = vsel %vm375, %v260, 0
      %v440 = vsel %vm375, %v264, 0
      %v443 = vsel %vm375, %v268, 0
      %v446 = vsel %vm375, %v272, 0
      %v449 = vsel %vm375, %v276, 0
      %v452 = vsel %vm375, %v280, 0
      %v455 = vsel %vm375, %v284, 0
      %v458 = vsel %vm375, %v288, 0
      %v461 = vsel %vm375, %v292, 0
      %v464 = vsel %vm375, %v296, 0
      %v467 = vsel %vm375, %v300, 0
      %v470 = vsel %vm375, %v304, 0
      %vm472 = vcmask 1043456
      %v474 = vsel %vm472, %v367, 0
      %476 = vmatprep.subr.mxu0 0.0
      %477 = vmatpush1.msra.mxu0 %v305
      %478 = vmatprep.subr.mxu0 0.0
      %479 = vmatpush1.msra.mxu0 %v306
      %480 = vmatprep.subr.mxu0 0.0
      %481 = vmatpush1.msra.mxu0 %v307
      %482 = vmatprep.subr.mxu0 0.0
      %483 = vmatpush1.msra.mxu0 %v308
      %484 = vmatprep.subr.mxu0 0.0
      %485 = vmatpush1.msra.mxu0 %v309
      %486 = vmatprep.subr.mxu0 0.0
      %487 = vmatpush1.msra.mxu0 %v310
      %488 = vmatprep.subr.mxu0 0.0
      %489 = vmatpush1.msra.mxu0 %v311
      %490 = vmatprep.subr.mxu0 0.0
      %491 = vmatpush1.msra.mxu0 %v312
      %492 = vmatprep.subr.mxu0 0.0
      %493 = vmatpush1.msra.mxu0 %v313
      %494 = vmatprep.subr.mxu0 0.0
      %495 = vmatpush1.msra.mxu0 %v314
      %496 = vmatprep.subr.mxu0 0.0
      %497 = vmatpush1.msra.mxu0 %v315
      %498 = vmatprep.subr.mxu0 0.0
      %499 = vmatpush1.msra.mxu0 %v316
      %500 = vmatprep.subr.mxu0 0.0
      %501 = vmatpush1.msra.mxu0 %v317
      %502 = vmatprep.subr.mxu0 0.0
      %503 = vmatpush1.msra.mxu0 %v318
      %504 = vmatprep.subr.mxu0 0.0
      %505 = vmatpush1.msra.mxu0 %v319
      %506 = vmatprep.subr.mxu0 0.0
      %507 = vmatpush1.msra.mxu0 %v320
      %508 = vmatprep.subr.mxu0 0.0
      %509 = vmatpush1.msra.mxu0 %v321
      %510 = vmatprep.subr.mxu0 0.0
      %511 = vmatpush1.msra.mxu0 %v322
      %512 = vmatprep.subr.mxu0 0.0
      %513 = vmatpush1.msra.mxu0 %v323
      %514 = vmatprep.subr.mxu0 0.0
      %515 = vmatpush1.msra.mxu0 %v324
      %516 = vmatprep.subr.mxu0 0.0
      %517 = vmatpush1.msra.mxu0 %v325
      %518 = vmatprep.subr.mxu0 0.0
      %519 = vmatpush1.msra.mxu0 %v326
      %520 = vmatprep.subr.mxu0 0.0
      %521 = vmatpush1.msra.mxu0 %v327
      %522 = vmatprep.subr.mxu0 0.0
      %523 = vmatpush1.msra.mxu0 %v328
      %524 = vmatprep.subr.mxu0 0.0
      %525 = vmatpush1.msra.mxu0 %v329
      %526 = vmatprep.subr.mxu0 0.0
      %527 = vmatpush1.msra.mxu0 %v330
      %528 = vmatprep.subr.mxu0 0.0
      %529 = vmatpush1.msra.mxu0 %v331
      %530 = vmatprep.subr.mxu0 0.0
      %531 = vmatpush1.msra.mxu0 %v332
      %532 = vmatprep.subr.mxu0 0.0
      %533 = vmatpush1.msra.mxu0 %v333
      %534 = vmatprep.subr.mxu0 0.0
      %535 = vmatpush1.msra.mxu0 %v334
      %536 = vmatprep.subr.mxu0 0.0
      %537 = vmatpush1.msra.mxu0 %v335
      %538 = vmatprep.subr.mxu0 0.0
      %539 = vmatpush1.msra.mxu0 %v336
      %540 = vmatprep.mubr.f32.mxu0 %v178
      %541 = vmatmul.mubr.f32.gmra.mrb[0].mxu0 %v177
      %v542 = vpop.f32.mrb[0].mxu0
      %v543 = vadd.f32 %v373, %v542
      %v544 = vpop.f32.mrb[0].mxu0
      %545 = vmatprep.mubr.f32.mxu0 %v182
      %546 = vmatmul.mubr.f32.gmra.mrb[0].mxu0 %v181
      %v547 = vpop.f32.mrb[0].mxu0
      %v548 = vadd.f32 %v373, %v547
      %v549 = vpop.f32.mrb[0].mxu0
      %550 = vmatprep.mubr.f32.mxu0 %v186
      %551 = vmatmul.mubr.f32.gmra.mrb[0].mxu0 %v185
      %v552 = vpop.f32.mrb[0].mxu0
      %v553 = vadd.f32 %v373, %v552
      %v554 = vpop.f32.mrb[0].mxu0
      %555 = vmatprep.mubr.f32.mxu0 %v190
      %556 = vmatmul.mubr.f32.gmra.mrb[0].mxu0 %v189
      %v557 = vpop.f32.mrb[0].mxu0
      %v558 = vadd.f32 %v373, %v557
      %v559 = vpop.f32.mrb[0].mxu0
      %560 = vmatprep.mubr.f32.mxu0 %v194
      %561 = vmatmul.mubr.f32.gmra.mrb[0].mxu0 %v193
      %v562 = vpop.f32.mrb[0].mxu0
      %v563 = vadd.f32 %v373, %v562
      %v564 = vpop.f32.mrb[0].mxu0
      %565 = vmatprep.mubr.f32.mxu0 %v198
      %566 = vmatmul.mubr.f32.gmra.mrb[0].mxu0 %v197
      %v567 = vpop.f32.mrb[0].mxu0
      %v568 = vadd.f32 %v373, %v567
      %v569 = vpop.f32.mrb[0].mxu0
      %570 = vmatprep.mubr.f32.mxu0 %v202
      %571 = vmatmul.mubr.f32.gmra.mrb[0].mxu0 %v201
      %v572 = vpop.f32.mrb[0].mxu0
      %v573 = vadd.f32 %v373, %v572
      %v574 = vpop.f32.mrb[0].mxu0
      %575 = vmatprep.mubr.f32.mxu0 %v206
      %576 = vmatmul.mubr.f32.gmra.mrb[0].mxu0 %v205
      %v577 = vpop.f32.mrb[0].mxu0
      %v578 = vadd.f32 %v373, %v577
      %v579 = vpop.f32.mrb[0].mxu0
      %580 = vmatprep.mubr.f32.mxu0 %v210
      %581 = vmatmul.mubr.f32.gmra.mrb[0].mxu0 %v209
      %v582 = vpop.f32.mrb[0].mxu0
      %v583 = vadd.f32 %v373, %v582
      %v584 = vpop.f32.mrb[0].mxu0
      %585 = vmatprep.mubr.f32.mxu0 %v214
      %586 = vmatmul.mubr.f32.gmra.mrb[0].mxu0 %v213
      %v587 = vpop.f32.mrb[0].mxu0
      %v588 = vadd.f32 %v373, %v587
      %v589 = vpop.f32.mrb[0].mxu0
      %590 = vmatprep.mubr.f32.mxu0 %v218
      %591 = vmatmul.mubr.f32.gmra.mrb[0].mxu0 %v217
      %v592 = vpop.f32.mrb[0].mxu0
      %v593 = vadd.f32 %v373, %v592
      %v594 = vpop.f32.mrb[0].mxu0
      %595 = vmatprep.mubr.f32.mxu0 %v222
      %596 = vmatmul.mubr.f32.gmra.mrb[0].mxu0 %v221
      %v597 = vpop.f32.mrb[0].mxu0
      %v598 = vadd.f32 %v373, %v597
      %v599 = vpop.f32.mrb[0].mxu0
      %600 = vmatprep.mubr.f32.mxu0 %v226
      %601 = vmatmul.mubr.f32.gmra.mrb[0].mxu0 %v225
      %v602 = vpop.f32.mrb[0].mxu0
      %v603 = vadd.f32 %v373, %v602
      %v604 = vpop.f32.mrb[0].mxu0
      %605 = vmatprep.mubr.f32.mxu0 %v230
      %606 = vmatmul.mubr.f32.gmra.mrb[0].mxu0 %v229
      %v607 = vpop.f32.mrb[0].mxu0
      %v608 = vadd.f32 %v373, %v607
      %v609 = vpop.f32.mrb[0].mxu0
      %610 = vmatprep.mubr.f32.mxu0 %v234
      %611 = vmatmul.mubr.f32.gmra.mrb[0].mxu0 %v233
      %v612 = vpop.f32.mrb[0].mxu0
      %v613 = vadd.f32 %v373, %v612
      %v614 = vpop.f32.mrb[0].mxu0
      %615 = vmatprep.mubr.f32.mxu0 %v238
      %616 = vmatmul.mubr.f32.gmra.mrb[0].mxu0 %v237
      %v617 = vpop.f32.mrb[0].mxu0
      %v618 = vadd.f32 %v373, %v617
      %v619 = vpop.f32.mrb[0].mxu0
      %620 = vmatprep.mubr.f32.mxu0 %v242
      %621 = vmatmul.mubr.f32.gmra.mrb[0].mxu0 %v241
      %v622 = vpop.f32.mrb[0].mxu0
      %v623 = vadd.f32 %v373, %v622
      %v624 = vpop.f32.mrb[0].mxu0
      %625 = vmatprep.mubr.f32.mxu0 %v246
      %626 = vmatmul.mubr.f32.gmra.mrb[0].mxu0 %v245
      %v627 = vpop.f32.mrb[0].mxu0
      %v628 = vadd.f32 %v373, %v627
      %v629 = vpop.f32.mrb[0].mxu0
      %630 = vmatprep.mubr.f32.mxu0 %v250
      %631 = vmatmul.mubr.f32.gmra.mrb[0].mxu0 %v249
      %v632 = vpop.f32.mrb[0].mxu0
      %v633 = vadd.f32 %v373, %v632
      %v634 = vpop.f32.mrb[0].mxu0
      %635 = vmatprep.mubr.f32.mxu0 %v254
      %636 = vmatmul.mubr.f32.gmra.mrb[0].mxu0 %v253
      %v637 = vpop.f32.mrb[0].mxu0
      %v638 = vadd.f32 %v373, %v637
      %v639 = vpop.f32.mrb[0].mxu0
      %640 = vmatprep.mubr.f32.mxu0 %v258
      %641 = vmatmul.mubr.f32.gmra.mrb[0].mxu0 %v257
      %v642 = vpop.f32.mrb[0].mxu0
      %v643 = vadd.f32 %v373, %v642
      %v644 = vpop.f32.mrb[0].mxu0
      %645 = vmatprep.mubr.f32.mxu0 %v262
      %646 = vmatmul.mubr.f32.gmra.mrb[0].mxu0 %v261
      %v647 = vpop.f32.mrb[0].mxu0
      %v648 = vadd.f32 %v373, %v647
      %v649 = vpop.f32.mrb[0].mxu0
      %650 = vmatprep.mubr.f32.mxu0 %v266
      %651 = vmatmul.mubr.f32.gmra.mrb[0].mxu0 %v265
      %v652 = vpop.f32.mrb[0].mxu0
      %v653 = vadd.f32 %v373, %v652
      %v654 = vpop.f32.mrb[0].mxu0
      %655 = vmatprep.mubr.f32.mxu0 %v270
      %656 = vmatmul.mubr.f32.gmra.mrb[0].mxu0 %v269
      %v657 = vpop.f32.mrb[0].mxu0
      %v658 = vadd.f32 %v373, %v657
      %v659 = vpop.f32.mrb[0].mxu0
      %660 = vmatprep.mubr.f32.mxu0 %v274
      %661 = vmatmul.mubr.f32.gmra.mrb[0].mxu0 %v273
      %v662 = vpop.f32.mrb[0].mxu0
      %v663 = vadd.f32 %v373, %v662
      %v664 = vpop.f32.mrb[0].mxu0
      %665 = vmatprep.mubr.f32.mxu0 %v278
      %666 = vmatmul.mubr.f32.gmra.mrb[0].mxu0 %v277
      %v667 = vpop.f32.mrb[0].mxu0
      %v668 = vadd.f32 %v373, %v667
      %v669 = vpop.f32.mrb[0].mxu0
      %670 = vmatprep.mubr.f32.mxu0 %v282
      %671 = vmatmul.mubr.f32.gmra.mrb[0].mxu0 %v281
      %v672 = vpop.f32.mrb[0].mxu0
      %v673 = vadd.f32 %v373, %v672
      %v674 = vpop.f32.mrb[0].mxu0
      %675 = vmatprep.mubr.f32.mxu0 %v286
      %676 = vmatmul.mubr.f32.gmra.mrb[0].mxu0 %v285
      %v677 = vpop.f32.mrb[0].mxu0
      %v678 = vadd.f32 %v373, %v677
      %v679 = vpop.f32.mrb[0].mxu0
      %680 = vmatprep.mubr.f32.mxu0 %v290
      %681 = vmatmul.mubr.f32.gmra.mrb[0].mxu0 %v289
      %v682 = vpop.f32.mrb[0].mxu0
      %v683 = vadd.f32 %v373, %v682
      %v684 = vpop.f32.mrb[0].mxu0
      %685 = vmatprep.mubr.f32.mxu0 %v294
      %686 = vmatmul.mubr.f32.gmra.mrb[0].mxu0 %v293
      %v687 = vpop.f32.mrb[0].mxu0
      %v688 = vadd.f32 %v373, %v687
      %v689 = vpop.f32.mrb[0].mxu0
      %690 = vmatprep.mubr.f32.mxu0 %v298
      %691 = vmatmul.mubr.f32.gmra.mrb[0].mxu0 %v297
      %v692 = vpop.f32.mrb[0].mxu0
      %v693 = vadd.f32 %v373, %v692
      %v694 = vpop.f32.mrb[0].mxu0
      %695 = vmatprep.mubr.f32.mxu0 %v302
      %696 = vmatmul.mubr.f32.gmra.mrb[0].mxu0 %v301
      %v697 = vpop.f32.mrb[0].mxu0
      %v698 = vadd.f32 %v373, %v697
      %v699 = vpop.f32.mrb[0].mxu0
      %700 = vdwg.mxu0
      %701 = vmatprep.subr.mxu0 0.0
      %702 = vmatpush1.msra.mxu0 %v337
      %703 = vmatprep.subr.mxu0 0.0
      %704 = vmatpush1.msra.mxu0 %v338
      %705 = vmatprep.subr.mxu0 0.0
      %706 = vmatpush1.msra.mxu0 %v339
      %707 = vmatprep.subr.mxu0 0.0
      %708 = vmatpush1.msra.mxu0 %v340
      %709 = vmatprep.subr.mxu0 0.0
      %710 = vmatpush1.msra.mxu0 %v341
      %711 = vmatprep.subr.mxu0 0.0
      %712 = vmatpush1.msra.mxu0 %v342
      %713 = vmatprep.subr.mxu0 0.0
      %714 = vmatpush1.msra.mxu0 %v343
      %715 = vmatprep.subr.mxu0 0.0
      %716 = vmatpush1.msra.mxu0 %v344
      %717 = vmatprep.subr.mxu0 0.0
      %718 = vmatpush1.msra.mxu0 %v345
      %719 = vmatprep.subr.mxu0 0.0
      %720 = vmatpush1.msra.mxu0 %v346
      %721 = vmatprep.subr.mxu0 0.0
      %722 = vmatpush1.msra.mxu0 %v347
      %723 = vmatprep.subr.mxu0 0.0
      %724 = vmatpush1.msra.mxu0 %v348
      %725 = vmatprep.subr.mxu0 0.0
      %726 = vmatpush1.msra.mxu0 %v349
      %727 = vmatprep.subr.mxu0 0.0
      %728 = vmatpush1.msra.mxu0 %v350
      %729 = vmatprep.subr.mxu0 0.0
      %730 = vmatpush1.msra.mxu0 %v351
      %731 = vmatprep.subr.mxu0 0.0
      %732 = vmatpush1.msra.mxu0 %v352
      %733 = vmatprep.subr.mxu0 0.0
      %734 = vmatpush1.msra.mxu0 %v353
      %735 = vmatprep.subr.mxu0 0.0
      %736 = vmatpush1.msra.mxu0 %v354
      %737 = vmatprep.subr.mxu0 0.0
      %738 = vmatpush1.msra.mxu0 %v355
      %739 = vmatprep.subr.mxu0 0.0
      %740 = vmatpush1.msra.mxu0 %v356
      %741 = vmatprep.subr.mxu0 0.0
      %742 = vmatpush1.msra.mxu0 %v357
      %743 = vmatprep.subr.mxu0 0.0
      %744 = vmatpush1.msra.mxu0 %v358
      %745 = vmatprep.subr.mxu0 0.0
      %746 = vmatpush1.msra.mxu0 %v359
      %747 = vmatprep.subr.mxu0 0.0
      %748 = vmatpush1.msra.mxu0 %v360
      %749 = vmatprep.subr.mxu0 0.0
      %750 = vmatpush1.msra.mxu0 %v361
      %751 = vmatprep.subr.mxu0 0.0
      %752 = vmatpush1.msra.mxu0 %v362
      %753 = vmatprep.subr.mxu0 0.0
      %754 = vmatpush1.msra.mxu0 %v363
      %755 = vmatprep.subr.mxu0 0.0
      %756 = vmatpush1.msra.mxu0 %v364
      %757 = vmatprep.subr.mxu0 0.0
      %758 = vmatpush1.msra.mxu0 %v365
      %759 = vmatprep.subr.mxu0 0.0
      %760 = vmatpush1.msra.mxu0 %v366
      %761 = vmatprep.subr.mxu0 0.0
      %762 = vmatpush1.msra.mxu0 %v474
      %763 = vmatprep.subr.mxu0 0.0
      %764 = vmatpush1.msra.mxu0 0.0
      %765 = vmatprep.mubr.f32.mxu0 %v377
      %766 = vmatmul.mubr.f32.gmra.mrb[0].mxu0 %v179
      %v767 = vpop.f32.mrb[0].mxu0
      %v768 = vadd.f32 %v543, %v767
      %v769 = vpop.f32.mrb[0].mxu0
      %770 = vmatprep.mubr.f32.mxu0 %v380
      %771 = vmatmul.mubr.f32.gmra.mrb[0].mxu0 %v183
      %v772 = vpop.f32.mrb[0].mxu0
      %v773 = vadd.f32 %v548, %v772
      %v774 = vpop.f32.mrb[0].mxu0
      %775 = vmatprep.mubr.f32.mxu0 %v383
      %776 = vmatmul.mubr.f32.gmra.mrb[0].mxu0 %v187
      %v777 = vpop.f32.mrb[0].mxu0
      %v778 = vadd.f32 %v553, %v777
      %v779 = vpop.f32.mrb[0].mxu0
      %780 = vmatprep.mubr.f32.mxu0 %v386
      %781 = vmatmul.mubr.f32.gmra.mrb[0].mxu0 %v191
      %v782 = vpop.f32.mrb[0].mxu0
      %v783 = vadd.f32 %v558, %v782
      %v784 = vpop.f32.mrb[0].mxu0
      %785 = vmatprep.mubr.f32.mxu0 %v389
      %786 = vmatmul.mubr.f32.gmra.mrb[0].mxu0 %v195
      %v787 = vpop.f32.mrb[0].mxu0
      %v788 = vadd.f32 %v563, %v787
      %v789 = vpop.f32.mrb[0].mxu0
      %790 = vmatprep.mubr.f32.mxu0 %v392
      %791 = vmatmul.mubr.f32.gmra.mrb[0].mxu0 %v199
      %v792 = vpop.f32.mrb[0].mxu0
      %v793 = vadd.f32 %v568, %v792
      %v794 = vpop.f32.mrb[0].mxu0
      %795 = vmatprep.mubr.f32.mxu0 %v395
      %796 = vmatmul.mubr.f32.gmra.mrb[0].mxu0 %v203
      %v797 = vpop.f32.mrb[0].mxu0
      %v798 = vadd.f32 %v573, %v797
      %v799 = vpop.f32.mrb[0].mxu0
      %800 = vmatprep.mubr.f32.mxu0 %v398
      %801 = vmatmul.mubr.f32.gmra.mrb[0].mxu0 %v207
      %v802 = vpop.f32.mrb[0].mxu0
      %v803 = vadd.f32 %v578, %v802
      %v804 = vpop.f32.mrb[0].mxu0
      %805 = vmatprep.mubr.f32.mxu0 %v401
      %806 = vmatmul.mubr.f32.gmra.mrb[0].mxu0 %v211
      %v807 = vpop.f32.mrb[0].mxu0
      %v808 = vadd.f32 %v583, %v807
      %v809 = vpop.f32.mrb[0].mxu0
      %810 = vmatprep.mubr.f32.mxu0 %v404
      %811 = vmatmul.mubr.f32.gmra.mrb[0].mxu0 %v215
      %v812 = vpop.f32.mrb[0].mxu0
      %v813 = vadd.f32 %v588, %v812
      %v814 = vpop.f32.mrb[0].mxu0
      %815 = vmatprep.mubr.f32.mxu0 %v407
      %816 = vmatmul.mubr.f32.gmra.mrb[0].mxu0 %v219
      %v817 = vpop.f32.mrb[0].mxu0
      %v818 = vadd.f32 %v593, %v817
      %v819 = vpop.f32.mrb[0].mxu0
      %820 = vmatprep.mubr.f32.mxu0 %v410
      %821 = vmatmul.mubr.f32.gmra.mrb[0].mxu0 %v223
      %v822 = vpop.f32.mrb[0].mxu0
      %v823 = vadd.f32 %v598, %v822
      %v824 = vpop.f32.mrb[0].mxu0
      %825 = vmatprep.mubr.f32.mxu0 %v413
      %826 = vmatmul.mubr.f32.gmra.mrb[0].mxu0 %v227
      %v827 = vpop.f32.mrb[0].mxu0
      %v828 = vadd.f32 %v603, %v827
      %v829 = vpop.f32.mrb[0].mxu0
      %830 = vmatprep.mubr.f32.mxu0 %v416
      %831 = vmatmul.mubr.f32.gmra.mrb[0].mxu0 %v231
      %v832 = vpop.f32.mrb[0].mxu0
      %v833 = vadd.f32 %v608, %v832
      %v834 = vpop.f32.mrb[0].mxu0
      %835 = vmatprep.mubr.f32.mxu0 %v419
      %836 = vmatmul.mubr.f32.gmra.mrb[0].mxu0 %v235
      %v837 = vpop.f32.mrb[0].mxu0
      %v838 = vadd.f32 %v613, %v837
      %v839 = vpop.f32.mrb[0].mxu0
      %840 = vmatprep.mubr.f32.mxu0 %v422
      %841 = vmatmul.mubr.f32.gmra.mrb[0].mxu0 %v239
      %v842 = vpop.f32.mrb[0].mxu0
      %v843 = vadd.f32 %v618, %v842
      %v844 = vpop.f32.mrb[0].mxu0
      %845 = vmatprep.mubr.f32.mxu0 %v425
      %846 = vmatmul.mubr.f32.gmra.mrb[0].mxu0 %v243
      %v847 = vpop.f32.mrb[0].mxu0
      %v848 = vadd.f32 %v623, %v847
      %v849 = vpop.f32.mrb[0].mxu0
      %850 = vmatprep.mubr.f32.mxu0 %v428
      %851 = vmatmul.mubr.f32.gmra.mrb[0].mxu0 %v247
      %v852 = vpop.f32.mrb[0].mxu0
      %v853 = vadd.f32 %v628, %v852
      %v854 = vpop.f32.mrb[0].mxu0
      %855 = vmatprep.mubr.f32.mxu0 %v431
      %856 = vmatmul.mubr.f32.gmra.mrb[0].mxu0 %v251
      %v857 = vpop.f32.mrb[0].mxu0
      %v858 = vadd.f32 %v633, %v857
      %v859 = vpop.f32.mrb[0].mxu0
      %860 = vmatprep.mubr.f32.mxu0 %v434
      %861 = vmatmul.mubr.f32.gmra.mrb[0].mxu0 %v255
      %v862 = vpop.f32.mrb[0].mxu0
      %v863 = vadd.f32 %v638, %v862
      %v864 = vpop.f32.mrb[0].mxu0
      %865 = vmatprep.mubr.f32.mxu0 %v437
      %866 = vmatmul.mubr.f32.gmra.mrb[0].mxu0 %v259
      %v867 = vpop.f32.mrb[0].mxu0
      %v868 = vadd.f32 %v643, %v867
      %v869 = vpop.f32.mrb[0].mxu0
      %870 = vmatprep.mubr.f32.mxu0 %v440
      %871 = vmatmul.mubr.f32.gmra.mrb[0].mxu0 %v263
      %v872 = vpop.f32.mrb[0].mxu0
      %v873 = vadd.f32 %v648, %v872
      %v874 = vpop.f32.mrb[0].mxu0
      %875 = vmatprep.mubr.f32.mxu0 %v443
      %876 = vmatmul.mubr.f32.gmra.mrb[0].mxu0 %v267
      %v877 = vpop.f32.mrb[0].mxu0
      %v878 = vadd.f32 %v653, %v877
      %v879 = vpop.f32.mrb[0].mxu0
      %880 = vmatprep.mubr.f32.mxu0 %v446
      %881 = vmatmul.mubr.f32.gmra.mrb[0].mxu0 %v271
      %v882 = vpop.f32.mrb[0].mxu0
      %v883 = vadd.f32 %v658, %v882
      %v884 = vpop.f32.mrb[0].mxu0
      %885 = vmatprep.mubr.f32.mxu0 %v449
      %886 = vmatmul.mubr.f32.gmra.mrb[0].mxu0 %v275
      %v887 = vpop.f32.mrb[0].mxu0
      %v888 = vadd.f32 %v663, %v887
      %v889 = vpop.f32.mrb[0].mxu0
      %890 = vmatprep.mubr.f32.mxu0 %v452
      %891 = vmatmul.mubr.f32.gmra.mrb[0].mxu0 %v279
      %v892 = vpop.f32.mrb[0].mxu0
      %v893 = vadd.f32 %v668, %v892
      %v894 = vpop.f32.mrb[0].mxu0
      %895 = vmatprep.mubr.f32.mxu0 %v455
      %896 = vmatmul.mubr.f32.gmra.mrb[0].mxu0 %v283
      %v897 = vpop.f32.mrb[0].mxu0
      %v898 = vadd.f32 %v673, %v897
      %v899 = vpop.f32.mrb[0].mxu0
      %900 = vmatprep.mubr.f32.mxu0 %v458
      %901 = vmatmul.mubr.f32.gmra.mrb[0].mxu0 %v287
      %v902 = vpop.f32.mrb[0].mxu0
      %v903 = vadd.f32 %v678, %v902
      %v904 = vpop.f32.mrb[0].mxu0
      %905 = vmatprep.mubr.f32.mxu0 %v461
      %906 = vmatmul.mubr.f32.gmra.mrb[0].mxu0 %v291
      %v907 = vpop.f32.mrb[0].mxu0
      %v908 = vadd.f32 %v683, %v907
      %v909 = vpop.f32.mrb[0].mxu0
      %910 = vmatprep.mubr.f32.mxu0 %v464
      %911 = vmatmul.mubr.f32.gmra.mrb[0].mxu0 %v295
      %v912 = vpop.f32.mrb[0].mxu0
      %v913 = vadd.f32 %v688, %v912
      %v914 = vpop.f32.mrb[0].mxu0
      %915 = vmatprep.mubr.f32.mxu0 %v467
      %916 = vmatmul.mubr.f32.gmra.mrb[0].mxu0 %v299
      %v917 = vpop.f32.mrb[0].mxu0
      %v918 = vadd.f32 %v693, %v917
      %v919 = vpop.f32.mrb[0].mxu0
      %920 = vmatprep.mubr.f32.mxu0 %v470
      %921 = vmatmul.mubr.f32.gmra.mrb[0].mxu0 %v303
      %v922 = vpop.f32.mrb[0].mxu0
      %v923 = vadd.f32 %v698, %v922
      %v924 = vpop.f32.mrb[0].mxu0
      %925 = vdwg.mxu0
      %926 = vst [vmem:[%s175] sm:$0xff] %v768
      %927 = vst [vmem:[%s175 + $0x8] sm:$0xff] %v773
      %928 = vst [vmem:[%s175 + $0x10] sm:$0xff] %v778
      %929 = vst [vmem:[%s175 + $0x18] sm:$0xff] %v783
      %930 = vst [vmem:[%s175 + $0x20] sm:$0xff] %v788
      %931 = vst [vmem:[%s175 + $0x28] sm:$0xff] %v793
      %932 = vst [vmem:[%s175 + $0x30] sm:$0xff] %v798
      %933 = vst [vmem:[%s175 + $0x38] sm:$0xff] %v803
      %934 = vst [vmem:[%s175 + $0x40] sm:$0xff] %v808
      %935 = vst [vmem:[%s175 + $0x48] sm:$0xff] %v813
      %936 = vst [vmem:[%s175 + $0x50] sm:$0xff] %v818
      %937 = vst [vmem:[%s175 + $0x58] sm:$0xff] %v823
      %938 = vst [vmem:[%s175 + $0x60] sm:$0xff] %v828
      %939 = vst [vmem:[%s175 + $0x68] sm:$0xff] %v833
      %940 = vst [vmem:[%s175 + $0x70] sm:$0xff] %v838
      %941 = vst [vmem:[%s175 + $0x78] sm:$0xff] %v843
      %942 = vst [vmem:[%s175 + $0x80] sm:$0xff] %v848
      %943 = vst [vmem:[%s175 + $0x88] sm:$0xff] %v853
      %944 = vst [vmem:[%s175 + $0x90] sm:$0xff] %v858
      %945 = vst [vmem:[%s175 + $0x98] sm:$0xff] %v863
      %946 = vst [vmem:[%s175 + $0xa0] sm:$0xff] %v868
      %947 = vst [vmem:[%s175 + $0xa8] sm:$0xff] %v873
      %948 = vst [vmem:[%s175 + $0xb0] sm:$0xff] %v878
      %949 = vst [vmem:[%s175 + $0xb8] sm:$0xff] %v883
      %950 = vst [vmem:[%s175 + $0xc0] sm:$0xff] %v888
      %951 = vst [vmem:[%s175 + $0xc8] sm:$0xff] %v893
      %952 = vst [vmem:[%s175 + $0xd0] sm:$0xff] %v898
      %953 = vst [vmem:[%s175 + $0xd8] sm:$0xff] %v903
      %954 = vst [vmem:[%s175 + $0xe0] sm:$0xff] %v908
      %955 = vst [vmem:[%s175 + $0xe8] sm:$0xff] %v913
      %956 = vst [vmem:[%s175 + $0xf0] sm:$0xff] %v918
      %957 = vst [vmem:[%s175 + $0xf8] sm:$0xff] %v923
      %s958 = smul.u32 32, %s14
      %p959 = scmp.lt.s32.totalorder %s958, 63
      %s960 = scalar_select %p959, %s958, 63
      %s961 = smul.addr %s960, 8
      %s962 = scalar_lea.vmem %s3, %s961
      // Predicated region
      $region33: #{uda_classifier_forward.1} parent=31 // pred_check
        %p963 = pneg %p100
      $region34: #{uda_classifier_forward.1} parent=31 // pred_check_branch
        %965 = sbr.rel (%p963) target = $region36
      $region35: #{uda_classifier_forward.1} parent=31 // pred_region
        %s966 = smul.u32 32, %s14
      $region36: #{uda_classifier_forward.1} parent=31 // pred_fallthru
        _
    $region32: #{uda_classifier_forward.1} parent=5 // pred_fallthru
      _
    %p967 = scmp.le.s32.totalorder 2, %s9
    // Predicated region
    $region37: #{uda_classifier_forward.1} parent=5 // pred_check
      %p968 = pneg %p967
    $region38: #{uda_classifier_forward.1} parent=5 // pred_check_branch
      %970 = sbr.rel (%p968) target = $region40
    $region39: #{uda_classifier_forward.1} parent=5 // pred_region
      %s971 = ssub.s32 %s9, 2
      // Predicated region
      $region41: #{uda_classifier_forward.1} parent=39 // pred_check
        %p972 = pneg %p106
      $region42: #{uda_classifier_forward.1} parent=39 // pred_check_branch
        %974 = sbr.rel (%p972) target = $region44
      $region43: #{uda_classifier_forward.1} parent=39 // pred_region
        %s975 = smul.u32 32, %s15
        %p976 = scmp.lt.s32.totalorder %s975, 63
        %s977 = scalar_select %p976, %s975, 63
        %s978 = smul.addr %s977, 8
        %s979 = scalar_lea.vmem %s3, %s978
      $region44: #{uda_classifier_forward.1} parent=39 // pred_fallthru
        _
    $region40: #{uda_classifier_forward.1} parent=5 // pred_fallthru
      _
  $region6: #{uda_classifier_forward.1} parent=0 // loop_footer
    %s13 = sadd.s32 1, %s9
  $region7: #{uda_classifier_forward.1} parent=0 // loop_footer_branch
    %8 = sbr.rel target = $region3
  $region8: #{uda_classifier_forward.1} parent=0 // loop_exit
    _

</llo_original>
